<compile_context>
chip_gen: v7x
topology: tpu7x:2x2x1
jax: 0.10.0
libtpu: 0.0.40
codegen_flags: <defaults>
</compile_context>

<pallas_src>
import functools

import jax
import jax.numpy as jnp
from jax.experimental import pallas as pl
from jax.experimental.pallas import tpu as pltpu


def _round_up(n, m):
    return ((n + m - 1) // m) * m


def _default_tile_b():
    """Per-generation default batch tile (rows)."""
    try:
        kind = jax.devices()[0].device_kind.lower()
    except Exception:
        kind = ""
    if "v6" in kind:
        return 32768   # 128 MiB VMEM: biggest tiles
    if "7" in kind:
        return 16384   # 64 MiB VMEM, 3.2 TB/s HBM: large but bounded tiles
    if "v5" in kind:
        return 8192
    return 8192


def _mlp_kernel(x_ref, w1_ref, b1_ref, w2_ref, b2_ref, o_ref, *, chunk, num_chunks):
    # Hoisted once per grid step (JAX does not CSE broadcasts inside loops).
    w1 = w1_ref[...]                              # (F, H), compute dtype (bf16/f32)
    b1 = b1_ref[...].astype(jnp.float32)          # (1, H) f32
    w2 = w2_ref[...].astype(jnp.float32)          # (1, H) f32
    b2 = b2_ref[0]                                # f32 scalar from SMEM

    def compute_chunk(start):
        xs = x_ref[pl.ds(start, chunk), :]                                   # (chunk, F)
        # fc1 on the MXU: (chunk, F) @ (F, H) -> (chunk, H), f32 accumulation.
        h = jnp.dot(xs, w1, preferred_element_type=jnp.float32)
        h = jnp.maximum(h + b1, 0.0)                                         # ReLU
        # fc2: contract hidden dim of the (1, H) weight row with h -> (1, chunk).
        # Result is lane-dense, so the store below is a full-width store.
        z = jax.lax.dot_general(
            w2, h,
            dimension_numbers=(((1,), (1,)), ((), ())),
            preferred_element_type=jnp.float32,
        )
        z = z + b2
        # Sigmoid: exp and approximate reciprocal both live on the EUP slot.
        p = pl.reciprocal(1.0 + jnp.exp(-z), approx=True)
        o_ref[:, pl.ds(start, chunk)] = p.astype(o_ref.dtype)

    if num_chunks == 1:
        compute_chunk(0)
    else:
        def body(c, carry):
            compute_chunk(pl.multiple_of(c * chunk, chunk))
            return carry
        jax.lax.fori_loop(0, num_chunks, body, 0, unroll=True)


def simple_nn_forward(x, w1, b1, w2, b2, *, tile_b=None, compute_dtype=jnp.bfloat16):
    """Fused forward pass of SimpleNN.

    x: (B, F); w1: (F, H); b1: (1, H); w2: (H, 1); b2: (1, 1).
    Returns (B, 1) float32 sigmoid probabilities.

    compute_dtype: dtype of the two dominant HBM streams (x and w1). Default
    bf16 (valid as an MXU input format on v5e/v6e/v7x); matmuls accumulate in
    f32, biases / fc2 weights / output stay f32. Pass jnp.float32 for the
    high-accuracy path, or None to keep x/w1 dtypes untouched.
    """
    B, F = x.shape
    H = w1.shape[1]

    if compute_dtype is not None:
        x = x.astype(compute_dtype)
        w1 = w1.astype(compute_dtype)

    # Layout plumbing (free, wrapper-side): w2 as a (1, H) f32 row, b1 as a
    # (1, H) f32 row, b2 as a (1,) f32 scalar destined for SMEM.
    w2_row = jnp.reshape(w2, (1, H)).astype(jnp.float32)
    b1_row = jnp.reshape(b1, (1, H)).astype(jnp.float32)
    b2_s = jnp.reshape(b2, (1,)).astype(jnp.float32)

    # Tile the batch. tile_b is a multiple of 128 so the lane-dense output
    # stores are unmasked; clamp for small batches.
    if tile_b is None:
        tile_b = _default_tile_b()
    tile_b = max(128, (int(tile_b) // 128) * 128)
    tile_b = min(tile_b, _round_up(B, 128))

    # No jnp.pad of x: the grid covers ceil(B / tile_b) blocks and Pallas clips
    # the partial edge block (OOB rows hold garbage; their outputs are sliced
    # off below). This avoids a full extra HBM read+write pass over x.
    num_blocks = pl.cdiv(B, tile_b)

    # Decouple the DMA tile from the compute working set: the f32 hidden
    # activation `h` is lane-padded 10 -> 128, so compute over sub-chunks of
    # the x block (<= tile_b/8 rows, >= 1024) instead of the full tile.
    if tile_b > 1024 and tile_b % 1024 == 0:
        chunk = max(1024, tile_b // 8)
    else:
        chunk = tile_b
    num_chunks = tile_b // chunk

    x_it = jnp.dtype(x.dtype).itemsize
    w_it = jnp.dtype(w1.dtype).itemsize
    cost = pl.CostEstimate(
        flops=2 * B * F * H + 2 * B * H + 4 * B,
        transcendentals=B,
        bytes_accessed=(B * F * x_it                 # x (dominant stream)
                        + F * H * w_it               # w1
                        + 2 * H * 4 + 4              # b1, w2, b2
                        + B * 4),                    # out
    )

    kernel = functools.partial(_mlp_kernel, chunk=chunk, num_chunks=num_chunks)

    out = pl.pallas_call(
        kernel,
        out_shape=jax.ShapeDtypeStruct((num_blocks, tile_b), jnp.float32),
        grid_spec=pltpu.PrefetchScalarGridSpec(
            num_scalar_prefetch=0,
            grid=(num_blocks,),
            in_specs=[
                # x: streamed per batch tile (double-buffered by the pipeline).
                pl.BlockSpec((tile_b, F), lambda i: (i, 0)),
                # Weights/biases: constant index_map -> stay VMEM-resident.
                pl.BlockSpec((F, H), lambda i: (0, 0)),
                pl.BlockSpec((1, H), lambda i: (0, 0)),
                pl.BlockSpec((1, H), lambda i: (0, 0)),
                # Scalar output bias in SMEM.
                pl.BlockSpec(memory_space=pltpu.MemorySpace.SMEM),
            ],
            # Lane-dense output tile: last dim = tile_b (multiple of 128).
            out_specs=pl.BlockSpec((1, tile_b), lambda i: (i, 0)),
        ),
        compiler_params=pltpu.CompilerParams(
            dimension_semantics=("parallel",),          # megacore sharding (v7x)
            vmem_limit_bytes=48 * 1024 * 1024,          # fits v5e/v6e/v7x budgets
        ),
        cost_estimate=cost,
    )(x, w1, b1_row, w2_row, b2_s)

    # (num_blocks, tile_b) -> (B, 1); drop edge-block rows past B.
    return out.reshape(num_blocks * tile_b, 1)[:B]


def init_params(key, input_size, hidden=10, out=1):
    """Deterministic parameter init (uniform, PyTorch-Linear-style bounds)."""
    k1, k2, k3, k4 = jax.random.split(key, 4)
    bound1 = 1.0 / jnp.sqrt(input_size)
    bound2 = 1.0 / jnp.sqrt(hidden)
    w1 = jax.random.uniform(k1, (input_size, hidden), jnp.float32, -bound1, bound1)
    b1 = jax.random.uniform(k2, (1, hidden), jnp.float32, -bound1, bound1)
    w2 = jax.random.uniform(k3, (hidden, out), jnp.float32, -bound2, bound2)
    b2 = jax.random.uniform(k4, (1, out), jnp.float32, -bound2, bound2)
    return w1, b1, w2, b2


if __name__ == "__main__":
    key = jax.random.PRNGKey(0)
    kx, kp = jax.random.split(key)

    batch = 8
    input_size = 32

    x = jax.random.normal(kx, (batch, input_size), jnp.float32)
    w1, b1, w2, b2 = init_params(kp, input_size)

    # Pure-JAX reference.
    h_ref = jnp.maximum(x @ w1 + b1, 0.0)
    ref = jax.nn.sigmoid(h_ref @ w2 + b2)

    # Default path: bf16 x/w1 streams, f32 accumulation, f32 output.
    out = simple_nn_forward(x, w1, b1, w2, b2)
    out = jax.block_until_ready(out)
    assert out.shape == (batch, 1)
    assert jnp.allclose(out, ref, atol=3e-2), "bf16 path mismatch vs reference"

    # High-accuracy f32 path.
    out32 = simple_nn_forward(x, w1, b1, w2, b2, compute_dtype=jnp.float32)
    out32 = jax.block_until_ready(out32)
    assert jnp.allclose(out32, ref, atol=5e-3), "f32 path mismatch vs reference"

    print("KERNEL_OK")
</pallas_src>

<mosaic_0001>
module attributes {stable_mosaic.version = 11 : i64} {
  func.func @_mlp_kernel(%arg0: i32, %arg1: memref<128x32xbf16, #tpu.memory_space<vmem>>, %arg2: memref<32x10xbf16, #tpu.memory_space<vmem>>, %arg3: memref<1x10xf32, #tpu.memory_space<vmem>>, %arg4: memref<1x10xf32, #tpu.memory_space<vmem>>, %arg5: memref<1xf32, #tpu.memory_space<smem>>, %arg6: memref<1x128xf32, #tpu.memory_space<vmem>>) attributes {dimension_semantics = [#tpu.dimension_semantics<parallel>], iteration_bounds = array<i64: 1>, scalar_prefetch = 0 : i64, scratch_operands = 0 : i64, tpu.core_type = #tpu.core_type<tc>, window_params = [{transform_indices = @transform_0, window_bounds = array<i64: 128, 32>}, {pipeline_mode = #tpu.pipeline_mode<synchronous>, transform_indices = @transform_1, window_bounds = array<i64: 32, 10>}, {pipeline_mode = #tpu.pipeline_mode<synchronous>, transform_indices = @transform_2, window_bounds = array<i64: 1, 10>}, {pipeline_mode = #tpu.pipeline_mode<synchronous>, transform_indices = @transform_3, window_bounds = array<i64: 1, 10>}, {transform_indices = @transform_4, window_bounds = array<i64: 1>}, {transform_indices = @transform_5, window_bounds = array<i64: 1, 128>}]} {
    %c0 = arith.constant 0 : index
    %c0_0 = arith.constant 0 : index
    %0 = vector.load %arg2[%c0, %c0_0] : memref<32x10xbf16, #tpu.memory_space<vmem>>, vector<32x10xbf16>
    %c0_1 = arith.constant 0 : index
    %c0_2 = arith.constant 0 : index
    %1 = vector.load %arg3[%c0_1, %c0_2] : memref<1x10xf32, #tpu.memory_space<vmem>>, vector<1x10xf32>
    %c0_3 = arith.constant 0 : index
    %c0_4 = arith.constant 0 : index
    %2 = vector.load %arg4[%c0_3, %c0_4] : memref<1x10xf32, #tpu.memory_space<vmem>>, vector<1x10xf32>
    %c0_5 = arith.constant 0 : index
    %3 = memref.load %arg5[%c0_5] : memref<1xf32, #tpu.memory_space<smem>>
    %c0_6 = arith.constant 0 : index
    %c0_7 = arith.constant 0 : index
    %4 = vector.load %arg1[%c0_6, %c0_7] : memref<128x32xbf16, #tpu.memory_space<vmem>>, vector<128x32xbf16>
    %cst = arith.constant dense<0.000000e+00> : vector<128x10xf32>
    %5 = tpu.matmul %4, %0, %cst {dimension_numbers = #tpu.dot_dimension_numbers<[1], [0], [0], [1], [0, 0, 1, 1], [], []>} : vector<128x32xbf16>, vector<32x10xbf16>, vector<128x10xf32> -> vector<128x10xf32>
    %6 = vector.broadcast %1 : vector<1x10xf32> to vector<128x10xf32>
    %7 = arith.addf %5, %6 : vector<128x10xf32>
    %cst_8 = arith.constant 0.000000e+00 : f32
    %8 = vector.broadcast %cst_8 : f32 to vector<128x10xf32>
    %9 = arith.maximumf %7, %8 : vector<128x10xf32>
    %cst_9 = arith.constant dense<0.000000e+00> : vector<1x128xf32>
    %10 = tpu.matmul %2, %9, %cst_9 {dimension_numbers = #tpu.dot_dimension_numbers<[1], [1], [0], [0], [0, 0, 1, 0], [], []>} : vector<1x10xf32>, vector<128x10xf32>, vector<1x128xf32> -> vector<1x128xf32>
    %11 = vector.broadcast %3 : f32 to vector<1x128xf32>
    %12 = arith.addf %10, %11 : vector<1x128xf32>
    %cst_10 = arith.constant 0.000000e+00 : f32
    %13 = vector.broadcast %cst_10 : f32 to vector<1x128xf32>
    %14 = arith.subf %13, %12 : vector<1x128xf32>
    %15 = math.exp %14 : vector<1x128xf32>
    %cst_11 = arith.constant 1.000000e+00 : f32
    %16 = vector.broadcast %cst_11 : f32 to vector<1x128xf32>
    %17 = arith.addf %16, %15 : vector<1x128xf32>
    %18 = tpu.reciprocal %17 {approx = true} : vector<1x128xf32> -> vector<1x128xf32>
    %c0_12 = arith.constant 0 : index
    %c0_13 = arith.constant 0 : index
    %19 = vector.load %arg6[%c0_12, %c0_13] : memref<1x128xf32, #tpu.memory_space<vmem>>, vector<1x128xf32>
    tpu.vector_store %arg6[%c0_12, %c0_13], %18 {strides = array<i32>} : memref<1x128xf32, #tpu.memory_space<vmem>>, vector<1x128xf32>,
    return
  }
  func.func @transform_0(%arg0: i32) -> (i32, i32) {
    %c0_i32 = arith.constant 0 : i32
    %c0_i32_0 = arith.constant 0 : i32
    return %arg0, %c0_i32 : i32, i32
  }
  func.func @transform_1(%arg0: i32) -> (i32, i32) {
    %c0_i32 = arith.constant 0 : i32
    %c0_i32_0 = arith.constant 0 : i32
    %c0_i32_1 = arith.constant 0 : i32
    return %c0_i32, %c0_i32_0 : i32, i32
  }
  func.func @transform_2(%arg0: i32) -> (i32, i32) {
    %c0_i32 = arith.constant 0 : i32
    %c0_i32_0 = arith.constant 0 : i32
    %c0_i32_1 = arith.constant 0 : i32
    return %c0_i32, %c0_i32_0 : i32, i32
  }
  func.func @transform_3(%arg0: i32) -> (i32, i32) {
    %c0_i32 = arith.constant 0 : i32
    %c0_i32_0 = arith.constant 0 : i32
    %c0_i32_1 = arith.constant 0 : i32
    return %c0_i32, %c0_i32_0 : i32, i32
  }
  func.func @transform_4(%arg0: i32) -> i32 {
    %c0_i32 = arith.constant 0 : i32
    %c0_i32_0 = arith.constant 0 : i32
    return %c0_i32 : i32
  }
  func.func @transform_5(%arg0: i32) -> (i32, i32) {
    %c0_i32 = arith.constant 0 : i32
    %c0_i32_0 = arith.constant 0 : i32
    return %arg0, %c0_i32 : i32, i32
  }
}

</mosaic_0001>

<llo_original>
// kernel: tpu_custom_call.1
$region0: #{tpu_custom_call.1}
  #allocation0 [shape = 'u32[]', space=smem, size = 0x4, offset = 0x4, fixed_abs, tag = 'smem constant byte address 0x4 - core index']
  #allocation1 [shape = 'u32[144,128]{1,0:T(1,128)}', space=vmem, size = 0x12000, scoped, tag = 'internal scratch']
  #allocation2 [shape = 'f32[1]{0:T(128)S(6)}', space=smem, size = 0x200, scoped, tag = 'scoped memory for tpu_custom_call.1']
  %s0 = inlined_call_operand.vmem [shape: bf16[8,32], index: 0, kind: input, shape index: {}]
  %s1 = inlined_call_operand.vmem [shape: bf16[32,10], index: 1, kind: input, shape index: {}]
  %s2 = inlined_call_operand.vmem [shape: f32[1,10], index: 2, kind: input, shape index: {}]
  %s3 = inlined_call_operand.vmem [shape: f32[1,10], index: 3, kind: input, shape index: {}]
  %s4 = inlined_call_operand.<no memory space> [shape: f32[1], index: 4, kind: input, shape index: {}]
  %s5 = inlined_call_operand.hbm [shape: f32[1,128], index: 5, kind: output, shape index: {}]
  %s6 = sld [smem:[#allocation0]]
  $region30: #{tpu_custom_call.1} parent=0
    _
  %s8 = ssub.s32 1, %s6
  %s9 = scalar_select 0, %s8, %s6
  %10 = sst [smem:[#allocation2]] %s4
  $region1: #{tpu_custom_call.1} parent=0
    #allocation3 [shape = 'u8[512]{0}', space=vmem, size = 0x400, scoped, tag = 'output window, operand 0, single buffered']
    #allocation4 [shape = 's32[1]{0}', space=sflag, size = 0x4, scoped, tag = 'scoped memory for tpu_custom_call.1']
    %11 = vsyncpa [#allocation4], 0
    // Predicated region
    $region2: #{tpu_custom_call.1} parent=1 // pred_check
      _
    $region3: #{tpu_custom_call.1} parent=1 // pred_check_branch
      %13 = sbr.rel (0) target = $region5
    $region4: #{tpu_custom_call.1} parent=1 // pred_region
      _
    $region5: #{tpu_custom_call.1} parent=1 // pred_fallthru
      _
    // Predicated region
    $region6: #{tpu_custom_call.1} parent=1 // pred_check
      _
    $region7: #{tpu_custom_call.1} parent=1 // pred_check_branch
      %15 = sbr.rel (0) target = $region9
    $region8: #{tpu_custom_call.1} parent=1 // pred_region
      _
    $region9: #{tpu_custom_call.1} parent=1 // pred_fallthru
      _
    // Predicated region
    $region10: #{tpu_custom_call.1} parent=1 // pred_check
      _
    $region11: #{tpu_custom_call.1} parent=1 // pred_check_branch
      %17 = sbr.rel (0) target = $region13
    $region12: #{tpu_custom_call.1} parent=1 // pred_region
      _
    $region13: #{tpu_custom_call.1} parent=1 // pred_fallthru
      _
    // Predicated region
    $region14: #{tpu_custom_call.1} parent=1 // pred_check
      _
    $region15: #{tpu_custom_call.1} parent=1 // pred_check_branch
      %19 = sbr.rel (0) target = $region17
    $region16: #{tpu_custom_call.1} parent=1 // pred_region
      _
    $region17: #{tpu_custom_call.1} parent=1 // pred_fallthru
      _
    // Predicated region
    $region18: #{tpu_custom_call.1} parent=1 // pred_check
      _
    $region19: #{tpu_custom_call.1} parent=1 // pred_check_branch
      %21 = sbr.rel (0) target = $region21
    $region20: #{tpu_custom_call.1} parent=1 // pred_region
      _
    $region21: #{tpu_custom_call.1} parent=1 // pred_fallthru
      _
    %v23 = vld [vmem:[%s1] sm:$0xf]
    %v24 = vld [vmem:[%s1 + $0x4] sm:$0xf]
    %v25 = vld [vmem:[%s1 + $0x8] sm:$0xf]
    %v26 = vld [vmem:[%s1 + $0xc] sm:$0xf]
    %v27 = vld [vmem:[%s2] sm:$0x1]
    %v28 = vld [vmem:[%s3] sm:$0x1]
    %s29 = sld [smem:[#allocation2]]
    %v30 = vld [vmem:[%s0] sm:$0xf]
    %v31 = vld [vmem:[%s0 + $0x4] sm:$0xf]
    %v32 = vld [vmem:[%s0 + $0x8] sm:$0xf]
    %v33 = vld [vmem:[%s0 + $0xc] sm:$0xf]
    %v34 = vld [vmem:[%s0 + $0x10] sm:$0xf]
    %v35 = vld [vmem:[%s0 + $0x14] sm:$0xf]
    %v36 = vld [vmem:[%s0 + $0x18] sm:$0xf]
    %v37 = vld [vmem:[%s0 + $0x1c] sm:$0xf]
    %v38 = vld [vmem:[%s0 + $0x20] sm:$0xf]
    %v39 = vld [vmem:[%s0 + $0x24] sm:$0xf]
    %v40 = vld [vmem:[%s0 + $0x28] sm:$0xf]
    %v41 = vld [vmem:[%s0 + $0x2c] sm:$0xf]
    %v42 = vld [vmem:[%s0 + $0x30] sm:$0xf]
    %v43 = vld [vmem:[%s0 + $0x34] sm:$0xf]
    %v44 = vld [vmem:[%s0 + $0x38] sm:$0xf]
    %v45 = vld [vmem:[%s0 + $0x3c] sm:$0xf]
    %v47 = vlaneseq
    %v48 = vshrl.u32 %v47, 7
    %v49 = vsub.s32 0, %v48
    %v50 = vrot.slane %v27, %v49
    %v68 = vunpack.c.l.b16 %v30
    %v69 = vunpack.c.l.b16 %v31
    %v70 = vunpack.c.l.b16 %v32
    %v71 = vunpack.c.l.b16 %v33
    %v72 = vunpack.c.l.b16 %v34
    %v73 = vunpack.c.l.b16 %v35
    %v74 = vunpack.c.l.b16 %v36
    %v75 = vunpack.c.l.b16 %v37
    %v76 = vunpack.c.l.b16 %v38
    %v77 = vunpack.c.l.b16 %v39
    %v78 = vunpack.c.l.b16 %v40
    %v79 = vunpack.c.l.b16 %v41
    %v80 = vunpack.c.l.b16 %v42
    %v81 = vunpack.c.l.b16 %v43
    %v82 = vunpack.c.l.b16 %v44
    %v83 = vunpack.c.l.b16 %v45
    %v84 = vpack.c.b16 %v69, %v68
    %v85 = vpack.c.b16 %v71, %v70
    %v86 = vpack.c.b16 %v73, %v72
    %v87 = vpack.c.b16 %v75, %v74
    %v88 = vpack.c.b16 %v77, %v76
    %v89 = vpack.c.b16 %v79, %v78
    %v90 = vpack.c.b16 %v81, %v80
    %v91 = vpack.c.b16 %v83, %v82
    %v96 = vunpack.c.l.b16 %v23
    %v97 = vunpack.c.l.b16 %v24
    %v98 = vunpack.c.l.b16 %v25
    %v99 = vunpack.c.l.b16 %v26
    %v100 = vpack.c.b16 %v97, %v96
    %v101 = vpack.c.b16 %v99, %v98
    %vm104 = vcmask 261120
    %v106 = vsel %vm104, %v84, 0
    %v109 = vsel %vm104, %v85, 0
    %v112 = vsel %vm104, %v86, 0
    %v115 = vsel %vm104, %v87, 0
    %v118 = vsel %vm104, %v88, 0
    %v121 = vsel %vm104, %v89, 0
    %v124 = vsel %vm104, %v90, 0
    %v127 = vsel %vm104, %v91, 0
    %129 = vmatprep.subr.bf16.mxu0 0
    %130 = vmatpush1.bf16.msra.mxu0 %v100
    %131 = vmatprep.subr.bf16.mxu0 0
    %132 = vmatpush1.bf16.msra.mxu0 %v101
    %133 = vmatprep.subr.bf16.mxu0 0
    %134 = vmatpush1.bf16.msra.mxu0 0
    %135 = vmatprep.subr.bf16.mxu0 0
    %136 = vmatpush1.bf16.msra.mxu0 0
    %137 = vmatprep.subr.bf16.mxu0 0
    %138 = vmatpush1.bf16.msra.mxu0 0
    %139 = vmatprep.subr.bf16.mxu0 0
    %140 = vmatpush1.bf16.msra.mxu0 0
    %141 = vmatprep.subr.bf16.mxu0 0
    %142 = vmatpush1.bf16.msra.mxu0 0
    %143 = vmatprep.subr.bf16.mxu0 0
    %144 = vmatpush1.bf16.msra.mxu0 0
    %145 = vmatprep.subr.bf16.mxu0 0
    %146 = vmatpush1.bf16.msra.mxu0 0
    %147 = vmatprep.subr.bf16.mxu0 0
    %148 = vmatpush1.bf16.msra.mxu0 0
    %149 = vmatprep.subr.bf16.mxu0 0
    %150 = vmatpush1.bf16.msra.mxu0 0
    %151 = vmatprep.subr.bf16.mxu0 0
    %152 = vmatpush1.bf16.msra.mxu0 0
    %153 = vmatprep.subr.bf16.mxu0 0
    %154 = vmatpush1.bf16.msra.mxu0 0
    %155 = vmatprep.subr.bf16.mxu0 0
    %156 = vmatpush1.bf16.msra.mxu0 0
    %157 = vmatprep.subr.bf16.mxu0 0
    %158 = vmatpush1.bf16.msra.mxu0 0
    %159 = vmatprep.subr.bf16.mxu0 0
    %160 = vmatpush1.bf16.msra.mxu0 0
    %161 = vmatprep.mubr.bf16.mxu0 0
    %162 = vmatmul.mubr.bf16.gmra.mrb[0].mxu0 %v106
    %v163 = vpop.f32.mrb[0].mxu0
    %v164 = vadd.f32 %v50, %v163
    %v165 = vpop.f32.mrb[0].mxu0
    %v166 = vpop.f32.mrb[0].mxu0
    %v167 = vadd.f32 %v50, %v166
    %v168 = vpop.f32.mrb[0].mxu0
    %169 = vmatprep.mubr.bf16.mxu0 0
    %170 = vmatmul.mubr.bf16.gmra.mrb[0].mxu0 %v109
    %v171 = vpop.f32.mrb[0].mxu0
    %v172 = vadd.f32 %v50, %v171
    %v173 = vpop.f32.mrb[0].mxu0
    %v174 = vpop.f32.mrb[0].mxu0
    %v175 = vadd.f32 %v50, %v174
    %v176 = vpop.f32.mrb[0].mxu0
    %177 = vmatprep.mubr.bf16.mxu0 0
    %178 = vmatmul.mubr.bf16.gmra.mrb[0].mxu0 %v112
    %v179 = vpop.f32.mrb[0].mxu0
    %v180 = vadd.f32 %v50, %v179
    %v181 = vpop.f32.mrb[0].mxu0
    %v182 = vpop.f32.mrb[0].mxu0
    %v183 = vadd.f32 %v50, %v182
    %v184 = vpop.f32.mrb[0].mxu0
    %185 = vmatprep.mubr.bf16.mxu0 0
    %186 = vmatmul.mubr.bf16.gmra.mrb[0].mxu0 %v115
    %v187 = vpop.f32.mrb[0].mxu0
    %v188 = vadd.f32 %v50, %v187
    %v189 = vpop.f32.mrb[0].mxu0
    %v190 = vpop.f32.mrb[0].mxu0
    %v191 = vadd.f32 %v50, %v190
    %v192 = vpop.f32.mrb[0].mxu0
    %193 = vmatprep.mubr.bf16.mxu0 0
    %194 = vmatmul.mubr.bf16.gmra.mrb[0].mxu0 %v118
    %v195 = vpop.f32.mrb[0].mxu0
    %v196 = vadd.f32 %v50, %v195
    %v197 = vpop.f32.mrb[0].mxu0
    %v198 = vpop.f32.mrb[0].mxu0
    %v199 = vadd.f32 %v50, %v198
    %v200 = vpop.f32.mrb[0].mxu0
    %201 = vmatprep.mubr.bf16.mxu0 0
    %202 = vmatmul.mubr.bf16.gmra.mrb[0].mxu0 %v121
    %v203 = vpop.f32.mrb[0].mxu0
    %v204 = vadd.f32 %v50, %v203
    %v205 = vpop.f32.mrb[0].mxu0
    %v206 = vpop.f32.mrb[0].mxu0
    %v207 = vadd.f32 %v50, %v206
    %v208 = vpop.f32.mrb[0].mxu0
    %209 = vmatprep.mubr.bf16.mxu0 0
    %210 = vmatmul.mubr.bf16.gmra.mrb[0].mxu0 %v124
    %v211 = vpop.f32.mrb[0].mxu0
    %v212 = vadd.f32 %v50, %v211
    %v213 = vpop.f32.mrb[0].mxu0
    %v214 = vpop.f32.mrb[0].mxu0
    %v215 = vadd.f32 %v50, %v214
    %v216 = vpop.f32.mrb[0].mxu0
    %217 = vmatprep.mubr.bf16.mxu0 0
    %218 = vmatmul.mubr.bf16.gmra.mrb[0].mxu0 %v127
    %v219 = vpop.f32.mrb[0].mxu0
    %v220 = vadd.f32 %v50, %v219
    %v221 = vpop.f32.mrb[0].mxu0
    %v222 = vpop.f32.mrb[0].mxu0
    %v223 = vadd.f32 %v50, %v222
    %v224 = vpop.f32.mrb[0].mxu0
    %225 = vdwg.mxu0
    %v226 = vmax.f32 %v164, 0.0
    %v227 = vmax.f32 %v167, 0.0
    %v228 = vmax.f32 %v172, 0.0
    %v229 = vmax.f32 %v175, 0.0
    %v230 = vmax.f32 %v180, 0.0
    %v231 = vmax.f32 %v183, 0.0
    %v232 = vmax.f32 %v188, 0.0
    %v233 = vmax.f32 %v191, 0.0
    %v234 = vmax.f32 %v196, 0.0
    %v235 = vmax.f32 %v199, 0.0
    %v236 = vmax.f32 %v204, 0.0
    %v237 = vmax.f32 %v207, 0.0
    %v238 = vmax.f32 %v212, 0.0
    %v239 = vmax.f32 %v215, 0.0
    %v240 = vmax.f32 %v220, 0.0
    %v241 = vmax.f32 %v223, 0.0
    %v242 = vstv %s29
    %vm243 = vcmask 80896
    %v245 = vsel %vm243, %v28, 0
    %v248 = vsel %vm243, %v226, 0
    %v251 = vsel %vm243, %v227, 0
    %v254 = vsel %vm243, %v228, 0
    %v257 = vsel %vm243, %v229, 0
    %v260 = vsel %vm243, %v230, 0
    %v263 = vsel %vm243, %v231, 0
    %v266 = vsel %vm243, %v232, 0
    %v269 = vsel %vm243, %v233, 0
    %v272 = vsel %vm243, %v234, 0
    %v275 = vsel %vm243, %v235, 0
    %v278 = vsel %vm243, %v236, 0
    %v281 = vsel %vm243, %v237, 0
    %v284 = vsel %vm243, %v238, 0
    %v287 = vsel %vm243, %v239, 0
    %v290 = vsel %vm243, %v240, 0
    %v293 = vsel %vm243, %v241, 0
    %295 = vmatprep.subr.mxu0 0.0
    %296 = vmatpush1.xpose.msra.mxu0 %v248
    %297 = vmatprep.subr.mxu0 0.0
    %298 = vmatpush1.xpose.msra.mxu0 %v251
    %299 = vmatprep.subr.mxu0 0.0
    %300 = vmatpush1.xpose.msra.mxu0 %v254
    %301 = vmatprep.subr.mxu0 0.0
    %302 = vmatpush1.xpose.msra.mxu0 %v257
    %303 = vmatprep.subr.mxu0 0.0
    %304 = vmatpush1.xpose.msra.mxu0 %v260
    %305 = vmatprep.subr.mxu0 0.0
    %306 = vmatpush1.xpose.msra.mxu0 %v263
    %307 = vmatprep.subr.mxu0 0.0
    %308 = vmatpush1.xpose.msra.mxu0 %v266
    %309 = vmatprep.subr.mxu0 0.0
    %310 = vmatpush1.xpose.msra.mxu0 %v269
    %311 = vmatprep.subr.mxu0 0.0
    %312 = vmatpush1.xpose.msra.mxu0 %v272
    %313 = vmatprep.subr.mxu0 0.0
    %314 = vmatpush1.xpose.msra.mxu0 %v275
    %315 = vmatprep.subr.mxu0 0.0
    %316 = vmatpush1.xpose.msra.mxu0 %v278
    %317 = vmatprep.subr.mxu0 0.0
    %318 = vmatpush1.xpose.msra.mxu0 %v281
    %319 = vmatprep.subr.mxu0 0.0
    %320 = vmatpush1.xpose.msra.mxu0 %v284
    %321 = vmatprep.subr.mxu0 0.0
    %322 = vmatpush1.xpose.msra.mxu0 %v287
    %323 = vmatprep.subr.mxu0 0.0
    %324 = vmatpush1.xpose.msra.mxu0 %v290
    %325 = vmatprep.subr.mxu0 0.0
    %326 = vmatpush1.xpose.msra.mxu0 %v293
    %327 = vmatprep.subr.mxu0 0.0
    %328 = vmatpush1.xpose.msra.mxu0 0.0
    %329 = vmatprep.subr.mxu0 0.0
    %330 = vmatpush1.xpose.msra.mxu0 0.0
    %331 = vmatprep.subr.mxu0 0.0
    %332 = vmatpush1.xpose.msra.mxu0 0.0
    %333 = vmatprep.subr.mxu0 0.0
    %334 = vmatpush1.xpose.msra.mxu0 0.0
    %335 = vmatprep.subr.mxu0 0.0
    %336 = vmatpush1.xpose.msra.mxu0 0.0
    %337 = vmatprep.subr.mxu0 0.0
    %338 = vmatpush1.xpose.msra.mxu0 0.0
    %339 = vmatprep.subr.mxu0 0.0
    %340 = vmatpush1.xpose.msra.mxu0 0.0
    %341 = vmatprep.subr.mxu0 0.0
    %342 = vmatpush1.xpose.msra.mxu0 0.0
    %343 = vmatprep.subr.mxu0 0.0
    %344 = vmatpush1.xpose.msra.mxu0 0.0
    %345 = vmatprep.subr.mxu0 0.0
    %346 = vmatpush1.xpose.msra.mxu0 0.0
    %347 = vmatprep.subr.mxu0 0.0
    %348 = vmatpush1.xpose.msra.mxu0 0.0
    %349 = vmatprep.subr.mxu0 0.0
    %350 = vmatpush1.xpose.msra.mxu0 0.0
    %351 = vmatprep.subr.mxu0 0.0
    %352 = vmatpush1.xpose.msra.mxu0 0.0
    %353 = vmatprep.subr.mxu0 0.0
    %354 = vmatpush1.xpose.msra.mxu0 0.0
    %355 = vmatprep.subr.mxu0 0.0
    %356 = vmatpush1.xpose.msra.mxu0 0.0
    %357 = vmatprep.subr.mxu0 0.0
    %358 = vmatpush1.xpose.msra.mxu0 0.0
    %359 = vmatprep.mubr.f32.mxu0 0.0
    %360 = vmatmul.mubr.f32.gmra.mrb[0].mxu0 %v245
    %v361 = vpop.f32.mrb[0].mxu0
    %v362 = vadd.f32 %v242, %v361
    %v363 = vpop.f32.mrb[0].mxu0
    %364 = vdwg.mxu0
    %v365 = vsub.f32 0.0, %v362
    %v366 = vmul.f32 %v365, 1.442695
    %v367 = vpow.pop %v366
    %v368 = vadd.f32 %v367, 1.0
    %v369 = vrcp.pop %v368
    %370 = vst [vmem:[#allocation3] sm:$0x1] %v369
    // Predicated region
    $region22: #{tpu_custom_call.1} parent=1 // pred_check
      _
    $region23: #{tpu_custom_call.1} parent=1 // pred_check_branch
      %372 = sbr.rel (0) target = $region25
    $region24: #{tpu_custom_call.1} parent=1 // pred_region
      %s374 = ssub.s32 16, 16
      %375 = vsyncadd [#allocation4], %s374
      %s377 = sshll.u32 [#allocation3], 4
      %s378 = int_to_ptr.vmem [resolvable:$true] %s377
      %380 = dma.vmem_to_hbm [thread:$0]  %s378, 16, %s5, [#allocation4]
    $region25: #{tpu_custom_call.1} parent=1 // pred_fallthru
      _
    // Predicated region
    $region26: #{tpu_custom_call.1} parent=1 // pred_check
      _
    $region27: #{tpu_custom_call.1} parent=1 // pred_check_branch
      %382 = sbr.rel (0) target = $region29
    $region28: #{tpu_custom_call.1} parent=1 // pred_region
      %383 = dma.done [#allocation4], 16
    $region29: #{tpu_custom_call.1} parent=1 // pred_fallthru
      _
    %384 = vsyncpa [#allocation4], 1

</llo_original>
